<compile_context>
chip_gen: v5e
topology: v5e:2x2
jax: 0.10.0
libtpu: 0.0.40
codegen_flags: <defaults>
</compile_context>

<pallas_src>
import jax
import jax.numpy as jnp
from jax.experimental import pallas as pl
from jax.experimental.pallas import tpu as pltpu


def coupling_kernel(z_ref, mask_ref, w1_ref, b1_ref, w2_ref, b2_ref,
                    x_ref, ldj_ref):
    z = z_ref[...]                          # (TB, D)  f32
    mask = mask_ref[...]                    # (1, D)   f32
    inv_mask = 1.0 - mask

    z_masked = z * mask                     # (TB, D)

    # Fused first layers of scale_net and translation_net:
    #   (TB, D) @ (D, 2H) -> (TB, 2H), ReLU
    h = jnp.maximum(
        jnp.dot(z_masked.astype(w1_ref.dtype), w1_ref[...],
                preferred_element_type=jnp.float32) + b1_ref[...],
        0.0)

    # Fused second layers via a block-diagonal (2H, 2D) slab:
    #   out2[:, :D] = scale-net pre-activation, out2[:, D:] = translation output
    out2 = jnp.dot(h.astype(w2_ref.dtype), w2_ref[...],
                   preferred_element_type=jnp.float32) + b2_ref[...]

    D = z.shape[1]
    s = jnp.tanh(out2[:, :D]) * inv_mask    # masked log-scale (needed for ldj too)
    t_raw = out2[:, D:]                     # translation; inv_mask applied once below

    # mask is binary => inv_mask * t_raw == inv_mask * (inv_mask * t_raw)
    x_ref[...] = z_masked + inv_mask * (z * jnp.exp(s) + t_raw)
    ldj_ref[...] = jnp.sum(s, axis=1, keepdims=True)   # (TB, 1)


def masked_coupling_forward(z, mask, params, *, tile_b=1024,
                            compute_dtype=jnp.bfloat16):
    """z: (B, D) f32, mask: (D,) f32, params: dict of the two MLPs' weights.

    compute_dtype controls the dtype of the matmul operands (weights + cast
    activations); accumulation and all elementwise math are f32.
    """
    B, D = z.shape
    H = params["w1s"].shape[1]

    # --- pack parameters into slabs once, outside the hot kernel ----------
    w1 = jnp.concatenate([params["w1s"], params["w1t"]], axis=1)            # (D, 2H)
    w1 = w1.astype(compute_dtype)
    b1 = jnp.concatenate([params["b1s"].reshape(1, H),
                          params["b1t"].reshape(1, H)], axis=1)             # (1, 2H) f32
    w2 = jnp.zeros((2 * H, 2 * D), jnp.float32)
    w2 = w2.at[:H, :D].set(params["w2s"]).at[H:, D:].set(params["w2t"])     # block-diag
    w2 = w2.astype(compute_dtype)                                           # (2H, 2D)
    b2 = jnp.concatenate([params["b2s"].reshape(1, D),
                          params["b2t"].reshape(1, D)], axis=1)             # (1, 2D) f32
    mask2d = mask.reshape(1, D).astype(jnp.float32)

    # --- batch tiling ------------------------------------------------------
    tb = min(tile_b, B)
    tb = max(8, (tb // 8) * 8)              # sublane-align the batch tile
    Bp = pl.cdiv(B, tb) * tb
    if Bp != B:                             # pad rows; they are sliced off below
        z = jnp.pad(z, ((0, Bp - B), (0, 0)))
    grid = (Bp // tb,)

    x, ldj = pl.pallas_call(
        coupling_kernel,
        out_shape=(jax.ShapeDtypeStruct((Bp, D), jnp.float32),
                   jax.ShapeDtypeStruct((Bp, 1), jnp.float32)),
        grid=grid,
        in_specs=[
            pl.BlockSpec((tb, D), lambda i: (i, 0)),          # z : pipelined
            pl.BlockSpec((1, D), lambda i: (0, 0)),           # mask : resident
            pl.BlockSpec((D, 2 * H), lambda i: (0, 0)),       # W1 slab : resident
            pl.BlockSpec((1, 2 * H), lambda i: (0, 0)),       # b1 slab : resident
            pl.BlockSpec((2 * H, 2 * D), lambda i: (0, 0)),   # W2 slab : resident
            pl.BlockSpec((1, 2 * D), lambda i: (0, 0)),       # b2 slab : resident
        ],
        out_specs=(
            pl.BlockSpec((tb, D), lambda i: (i, 0)),          # x
            pl.BlockSpec((tb, 1), lambda i: (i, 0)),          # log_det_J column
        ),
        compiler_params=pltpu.CompilerParams(
            dimension_semantics=("parallel",)),
    )(z, mask2d, w1, b1, w2, b2)

    return x[:B], ldj[:B, 0]


def reference_forward(z, mask, params):
    mask = mask.reshape(1, -1)
    inv = 1.0 - mask
    zm = z * mask
    hs = jnp.maximum(zm @ params["w1s"] + params["b1s"], 0.0)
    s = jnp.tanh(hs @ params["w2s"] + params["b2s"]) * inv
    ht = jnp.maximum(zm @ params["w1t"] + params["b1t"], 0.0)
    t = (ht @ params["w2t"] + params["b2t"]) * inv
    x = zm + inv * (z * jnp.exp(s) + t)
    return x, jnp.sum(s, axis=1)


if __name__ == "__main__":
    B, D, H = 8, 16, 32   # batch, feature_dim, hidden

    key = jax.random.PRNGKey(0)
    kz, kw1s, kw2s, kw1t, kw2t = jax.random.split(key, 5)

    z = jax.random.normal(kz, (B, D), dtype=jnp.float32)

    # alternating binary mask over features (checkerboard along feature dim)
    mask = (jnp.arange(D) % 2).astype(jnp.float32)

    # deterministic small-scale parameter init (synthetic weights, no checkpoint)
    params = {
        "w1s": 0.1 * jax.random.normal(kw1s, (D, H), dtype=jnp.float32),
        "b1s": jnp.zeros((1, H), dtype=jnp.float32),
        "w2s": 0.1 * jax.random.normal(kw2s, (H, D), dtype=jnp.float32),
        "b2s": jnp.zeros((1, D), dtype=jnp.float32),
        "w1t": 0.1 * jax.random.normal(kw1t, (D, H), dtype=jnp.float32),
        "b1t": jnp.zeros((1, H), dtype=jnp.float32),
        "w2t": 0.1 * jax.random.normal(kw2t, (H, D), dtype=jnp.float32),
        "b2t": jnp.zeros((1, D), dtype=jnp.float32),
    }

    x_ref, ldj_ref = reference_forward(z, mask, params)

    # 1) f32 matmul path: bit-faithful to the module, tight tolerance.
    x32, ldj32 = masked_coupling_forward(z, mask, params,
                                         compute_dtype=jnp.float32)
    jax.block_until_ready((x32, ldj32))
    assert x32.shape == (B, D) and ldj32.shape == (B,)
    assert jnp.allclose(x32, x_ref, atol=1e-5, rtol=1e-5)
    assert jnp.allclose(ldj32, ldj_ref, atol=1e-5, rtol=1e-5)

    # 2) default bf16-MXU path (perf config for v5e/v6e/v7x): small quantization
    #    error from bf16 matmul operands, f32 accumulation.
    x_bf, ldj_bf = masked_coupling_forward(z, mask, params)
    jax.block_until_ready((x_bf, ldj_bf))
    assert jnp.allclose(x_bf, x_ref, atol=3e-2, rtol=3e-2)
    assert jnp.allclose(ldj_bf, ldj_ref, atol=3e-2, rtol=3e-2)

    # 3) exercise the gridded/padded batch path (B not a multiple of the tile).
    B2 = 37
    z2 = jax.random.normal(jax.random.PRNGKey(1), (B2, D), dtype=jnp.float32)
    x2, ldj2 = masked_coupling_forward(z2, mask, params, tile_b=32,
                                       compute_dtype=jnp.float32)
    jax.block_until_ready((x2, ldj2))
    x2_ref, ldj2_ref = reference_forward(z2, mask, params)
    assert x2.shape == (B2, D) and ldj2.shape == (B2,)
    assert jnp.allclose(x2, x2_ref, atol=1e-5, rtol=1e-5)
    assert jnp.allclose(ldj2, ldj2_ref, atol=1e-5, rtol=1e-5)

    print("KERNEL_OK")
</pallas_src>

<mosaic_0001>
module attributes {stable_mosaic.version = 11 : i64} {
  func.func @coupling_kernel(%arg0: i32, %arg1: memref<8x16xf32, #tpu.memory_space<vmem>>, %arg2: memref<1x16xf32, #tpu.memory_space<vmem>>, %arg3: memref<16x64xf32, #tpu.memory_space<vmem>>, %arg4: memref<1x64xf32, #tpu.memory_space<vmem>>, %arg5: memref<64x32xf32, #tpu.memory_space<vmem>>, %arg6: memref<1x32xf32, #tpu.memory_space<vmem>>, %arg7: memref<8x16xf32, #tpu.memory_space<vmem>>, %arg8: memref<8x1xf32, #tpu.memory_space<vmem>>) attributes {dimension_semantics = [#tpu.dimension_semantics<parallel>], iteration_bounds = array<i64: 1>, scalar_prefetch = 0 : i64, scratch_operands = 0 : i64, tpu.core_type = #tpu.core_type<tc>, window_params = [{transform_indices = @transform_0, window_bounds = array<i64: 8, 16>}, {pipeline_mode = #tpu.pipeline_mode<synchronous>, transform_indices = @transform_1, window_bounds = array<i64: 1, 16>}, {pipeline_mode = #tpu.pipeline_mode<synchronous>, transform_indices = @transform_2, window_bounds = array<i64: 16, 64>}, {pipeline_mode = #tpu.pipeline_mode<synchronous>, transform_indices = @transform_3, window_bounds = array<i64: 1, 64>}, {pipeline_mode = #tpu.pipeline_mode<synchronous>, transform_indices = @transform_4, window_bounds = array<i64: 64, 32>}, {pipeline_mode = #tpu.pipeline_mode<synchronous>, transform_indices = @transform_5, window_bounds = array<i64: 1, 32>}, {transform_indices = @transform_6, window_bounds = array<i64: 8, 16>}, {transform_indices = @transform_7, window_bounds = array<i64: 8, 1>}]} {
    %c0 = arith.constant 0 : index
    %c0_0 = arith.constant 0 : index
    %0 = vector.load %arg1[%c0, %c0_0] : memref<8x16xf32, #tpu.memory_space<vmem>>, vector<8x16xf32>
    %c0_1 = arith.constant 0 : index
    %c0_2 = arith.constant 0 : index
    %1 = vector.load %arg2[%c0_1, %c0_2] : memref<1x16xf32, #tpu.memory_space<vmem>>, vector<1x16xf32>
    %cst = arith.constant 1.000000e+00 : f32
    %2 = vector.broadcast %cst : f32 to vector<1x16xf32>
    %3 = arith.subf %2, %1 : vector<1x16xf32>
    %4 = vector.broadcast %1 : vector<1x16xf32> to vector<8x16xf32>
    %5 = arith.mulf %0, %4 : vector<8x16xf32>
    %c0_3 = arith.constant 0 : index
    %c0_4 = arith.constant 0 : index
    %6 = vector.load %arg3[%c0_3, %c0_4] : memref<16x64xf32, #tpu.memory_space<vmem>>, vector<16x64xf32>
    %cst_5 = arith.constant dense<0.000000e+00> : vector<8x64xf32>
    %7 = tpu.matmul %5, %6, %cst_5 {dimension_numbers = #tpu.dot_dimension_numbers<[1], [0], [0], [1], [0, 0, 1, 1], [], []>} : vector<8x16xf32>, vector<16x64xf32>, vector<8x64xf32> -> vector<8x64xf32>
    %c0_6 = arith.constant 0 : index
    %c0_7 = arith.constant 0 : index
    %8 = vector.load %arg4[%c0_6, %c0_7] : memref<1x64xf32, #tpu.memory_space<vmem>>, vector<1x64xf32>
    %9 = vector.broadcast %8 : vector<1x64xf32> to vector<8x64xf32>
    %10 = arith.addf %7, %9 : vector<8x64xf32>
    %cst_8 = arith.constant 0.000000e+00 : f32
    %11 = vector.broadcast %cst_8 : f32 to vector<8x64xf32>
    %12 = arith.maximumf %10, %11 : vector<8x64xf32>
    %c0_9 = arith.constant 0 : index
    %c0_10 = arith.constant 0 : index
    %13 = vector.load %arg5[%c0_9, %c0_10] : memref<64x32xf32, #tpu.memory_space<vmem>>, vector<64x32xf32>
    %cst_11 = arith.constant dense<0.000000e+00> : vector<8x32xf32>
    %14 = tpu.matmul %12, %13, %cst_11 {dimension_numbers = #tpu.dot_dimension_numbers<[1], [0], [0], [1], [0, 0, 1, 1], [], []>} : vector<8x64xf32>, vector<64x32xf32>, vector<8x32xf32> -> vector<8x32xf32>
    %c0_12 = arith.constant 0 : index
    %c0_13 = arith.constant 0 : index
    %15 = vector.load %arg6[%c0_12, %c0_13] : memref<1x32xf32, #tpu.memory_space<vmem>>, vector<1x32xf32>
    %16 = vector.broadcast %15 : vector<1x32xf32> to vector<8x32xf32>
    %17 = arith.addf %14, %16 : vector<8x32xf32>
    %18 = vector.extract_strided_slice %17 {offsets = [0, 0], sizes = [8, 16], strides = [1, 1]} : vector<8x32xf32> to vector<8x16xf32>
    %19 = math.tanh %18 : vector<8x16xf32>
    %20 = vector.broadcast %3 : vector<1x16xf32> to vector<8x16xf32>
    %21 = arith.mulf %19, %20 : vector<8x16xf32>
    %22 = vector.extract_strided_slice %17 {offsets = [0, 16], sizes = [8, 16], strides = [1, 1]} : vector<8x32xf32> to vector<8x16xf32>
    %23 = math.exp %21 : vector<8x16xf32>
    %24 = arith.mulf %0, %23 : vector<8x16xf32>
    %25 = arith.addf %24, %22 : vector<8x16xf32>
    %26 = vector.broadcast %3 : vector<1x16xf32> to vector<8x16xf32>
    %27 = arith.mulf %26, %25 : vector<8x16xf32>
    %28 = arith.addf %5, %27 : vector<8x16xf32>
    %c0_14 = arith.constant 0 : index
    %c0_15 = arith.constant 0 : index
    %29 = vector.load %arg7[%c0_14, %c0_15] : memref<8x16xf32, #tpu.memory_space<vmem>>, vector<8x16xf32>
    tpu.vector_store %arg7[%c0_14, %c0_15], %28 {strides = array<i32>} : memref<8x16xf32, #tpu.memory_space<vmem>>, vector<8x16xf32>,
    %cst_16 = arith.constant dense<0.000000e+00> : vector<8xf32>
    %30 = vector.multi_reduction <add>, %21, %cst_16 [1] : vector<8x16xf32> to vector<8xf32>
    %31 = vector.shape_cast %30 : vector<8xf32> to vector<8x1xf32>
    %c0_17 = arith.constant 0 : index
    %c0_18 = arith.constant 0 : index
    %32 = vector.load %arg8[%c0_17, %c0_18] : memref<8x1xf32, #tpu.memory_space<vmem>>, vector<8x1xf32>
    tpu.vector_store %arg8[%c0_17, %c0_18], %31 {strides = array<i32>} : memref<8x1xf32, #tpu.memory_space<vmem>>, vector<8x1xf32>,
    return
  }
  func.func @transform_0(%arg0: i32) -> (i32, i32) {
    %c0_i32 = arith.constant 0 : i32
    %c0_i32_0 = arith.constant 0 : i32
    return %arg0, %c0_i32 : i32, i32
  }
  func.func @transform_1(%arg0: i32) -> (i32, i32) {
    %c0_i32 = arith.constant 0 : i32
    %c0_i32_0 = arith.constant 0 : i32
    %c0_i32_1 = arith.constant 0 : i32
    return %c0_i32, %c0_i32_0 : i32, i32
  }
  func.func @transform_2(%arg0: i32) -> (i32, i32) {
    %c0_i32 = arith.constant 0 : i32
    %c0_i32_0 = arith.constant 0 : i32
    %c0_i32_1 = arith.constant 0 : i32
    return %c0_i32, %c0_i32_0 : i32, i32
  }
  func.func @transform_3(%arg0: i32) -> (i32, i32) {
    %c0_i32 = arith.constant 0 : i32
    %c0_i32_0 = arith.constant 0 : i32
    %c0_i32_1 = arith.constant 0 : i32
    return %c0_i32, %c0_i32_0 : i32, i32
  }
  func.func @transform_4(%arg0: i32) -> (i32, i32) {
    %c0_i32 = arith.constant 0 : i32
    %c0_i32_0 = arith.constant 0 : i32
    %c0_i32_1 = arith.constant 0 : i32
    return %c0_i32, %c0_i32_0 : i32, i32
  }
  func.func @transform_5(%arg0: i32) -> (i32, i32) {
    %c0_i32 = arith.constant 0 : i32
    %c0_i32_0 = arith.constant 0 : i32
    %c0_i32_1 = arith.constant 0 : i32
    return %c0_i32, %c0_i32_0 : i32, i32
  }
  func.func @transform_6(%arg0: i32) -> (i32, i32) {
    %c0_i32 = arith.constant 0 : i32
    %c0_i32_0 = arith.constant 0 : i32
    return %arg0, %c0_i32 : i32, i32
  }
  func.func @transform_7(%arg0: i32) -> (i32, i32) {
    %c0_i32 = arith.constant 0 : i32
    %c0_i32_0 = arith.constant 0 : i32
    return %arg0, %c0_i32 : i32, i32
  }
}

</mosaic_0001>

<llo_original>
// kernel: tpu_custom_call.1
$region0: #{tpu_custom_call.1}
  #allocation0 [shape = 'u32[]', space=smem, size = 0x4, offset = 0x4, fixed_abs, tag = 'smem constant byte address 0x4 - core index']
  #allocation1 [shape = 'u32[72,128]{1,0:T(1,128)}', space=vmem, size = 0x9000, scoped, tag = 'internal scratch']
  %s0 = inlined_call_operand.vmem [shape: f32[8,16], index: 0, kind: input, shape index: {}]
  %s1 = inlined_call_operand.vmem [shape: f32[1,16], index: 1, kind: input, shape index: {}]
  %s2 = inlined_call_operand.vmem [shape: f32[16,64], index: 2, kind: input, shape index: {}]
  %s3 = inlined_call_operand.vmem [shape: f32[1,64], index: 3, kind: input, shape index: {}]
  %s4 = inlined_call_operand.vmem [shape: f32[64,32], index: 4, kind: input, shape index: {}]
  %s5 = inlined_call_operand.vmem [shape: f32[1,32], index: 5, kind: input, shape index: {}]
  %s6 = inlined_call_operand.hbm [shape: f32[8,16], index: 6, kind: output, shape index: {0}]
  %s7 = inlined_call_operand.vmem [shape: f32[8,1], index: 7, kind: output, shape index: {1}]
  %8 = xla_tuple %s6, %s7
  %s9 = sld [smem:[#allocation0]]
  $region42: #{tpu_custom_call.1} parent=0
    _
  %s11 = ssub.s32 1, %s9
  %s12 = scalar_select 0, %s11, %s9
  $region1: #{tpu_custom_call.1} parent=0
    #allocation2 [shape = 'u8[4096]{0}', space=vmem, size = 0x1000, scoped, tag = 'output window, operand 0, single buffered']
    #allocation3 [shape = 's32[1]{0}', space=sflag, size = 0x4, scoped, tag = 'scoped memory for tpu_custom_call.1']
    %13 = vsyncpa [#allocation3], 0
    // Predicated region
    $region2: #{tpu_custom_call.1} parent=1 // pred_check
      _
    $region3: #{tpu_custom_call.1} parent=1 // pred_check_branch
      %15 = sbr.rel (0) target = $region5
    $region4: #{tpu_custom_call.1} parent=1 // pred_region
      _
    $region5: #{tpu_custom_call.1} parent=1 // pred_fallthru
      _
    // Predicated region
    $region6: #{tpu_custom_call.1} parent=1 // pred_check
      _
    $region7: #{tpu_custom_call.1} parent=1 // pred_check_branch
      %17 = sbr.rel (0) target = $region9
    $region8: #{tpu_custom_call.1} parent=1 // pred_region
      _
    $region9: #{tpu_custom_call.1} parent=1 // pred_fallthru
      _
    // Predicated region
    $region10: #{tpu_custom_call.1} parent=1 // pred_check
      _
    $region11: #{tpu_custom_call.1} parent=1 // pred_check_branch
      %19 = sbr.rel (0) target = $region13
    $region12: #{tpu_custom_call.1} parent=1 // pred_region
      _
    $region13: #{tpu_custom_call.1} parent=1 // pred_fallthru
      _
    // Predicated region
    $region14: #{tpu_custom_call.1} parent=1 // pred_check
      _
    $region15: #{tpu_custom_call.1} parent=1 // pred_check_branch
      %21 = sbr.rel (0) target = $region17
    $region16: #{tpu_custom_call.1} parent=1 // pred_region
      _
    $region17: #{tpu_custom_call.1} parent=1 // pred_fallthru
      _
    // Predicated region
    $region18: #{tpu_custom_call.1} parent=1 // pred_check
      _
    $region19: #{tpu_custom_call.1} parent=1 // pred_check_branch
      %23 = sbr.rel (0) target = $region21
    $region20: #{tpu_custom_call.1} parent=1 // pred_region
      _
    $region21: #{tpu_custom_call.1} parent=1 // pred_fallthru
      _
    // Predicated region
    $region22: #{tpu_custom_call.1} parent=1 // pred_check
      _
    $region23: #{tpu_custom_call.1} parent=1 // pred_check_branch
      %25 = sbr.rel (0) target = $region25
    $region24: #{tpu_custom_call.1} parent=1 // pred_region
      _
    $region25: #{tpu_custom_call.1} parent=1 // pred_fallthru
      _
    %v26 = vld [vmem:[%s0] sm:$0xff]
    %v27 = vld [vmem:[%s1] sm:$0x1]
    %v28 = vsub.f32 1.0, %v27
    %v30 = vperm.slane %v27, 0
    %v32 = vmul.f32 %v26, %v30
    %v33 = vld [vmem:[%s2] sm:$0xff]
    %v34 = vld [vmem:[%s2 + $0x8] sm:$0xff]
    %v35 = vld [vmem:[%s3] sm:$0x1]
    %v37 = vperm.slane %v35, 0
    %vm39 = vcmask 130048
    %v41 = vsel %vm39, %v32, 0
    %43 = vmatpush.msra.mxu0 0.0
    %44 = vmatpush.msra.mxu0 0.0
    %45 = vmatpush.msra.mxu0 0.0
    %46 = vmatpush.msra.mxu0 0.0
    %47 = vmatpush.msra.mxu0 0.0
    %48 = vmatpush.msra.mxu0 0.0
    %49 = vmatpush.msra.mxu0 0.0
    %50 = vmatpush.msra.mxu0 0.0
    %51 = vmatpush.msra.mxu0 0.0
    %52 = vmatpush.msra.mxu0 0.0
    %53 = vmatpush.msra.mxu0 0.0
    %54 = vmatpush.msra.mxu0 0.0
    %55 = vmatpush.msra.mxu0 0.0
    %56 = vmatpush.msra.mxu0 0.0
    %57 = vmatpush.msra.mxu0 %v34
    %58 = vmatpush.msra.mxu0 %v33
    %59 = vmatmul.f32.gmra.mxu0 %v41
    %v60 = vpop.f32.mrf.mxu0
    %v61 = vadd.f32 %v37, %v60
    %62 = vdwg.mxu0
    %v63 = vmax.f32 %v61, 0.0
    %v64 = vld [vmem:[%s4] sm:$0xff]
    %v65 = vld [vmem:[%s4 + $0x8] sm:$0xff]
    %v66 = vld [vmem:[%s4 + $0x10] sm:$0xff]
    %v67 = vld [vmem:[%s4 + $0x18] sm:$0xff]
    %v68 = vld [vmem:[%s4 + $0x20] sm:$0xff]
    %v69 = vld [vmem:[%s4 + $0x28] sm:$0xff]
    %v70 = vld [vmem:[%s4 + $0x30] sm:$0xff]
    %v71 = vld [vmem:[%s4 + $0x38] sm:$0xff]
    %v72 = vld [vmem:[%s5] sm:$0x1]
    %v74 = vperm.slane %v72, 0
    %vm76 = vcmask 523264
    %v78 = vsel %vm76, %v63, 0
    %80 = vmatpush.msra.mxu0 0.0
    %81 = vmatpush.msra.mxu0 0.0
    %82 = vmatpush.msra.mxu0 0.0
    %83 = vmatpush.msra.mxu0 0.0
    %84 = vmatpush.msra.mxu0 0.0
    %85 = vmatpush.msra.mxu0 0.0
    %86 = vmatpush.msra.mxu0 0.0
    %87 = vmatpush.msra.mxu0 0.0
    %88 = vmatpush.msra.mxu0 %v71
    %89 = vmatpush.msra.mxu0 %v70
    %90 = vmatpush.msra.mxu0 %v69
    %91 = vmatpush.msra.mxu0 %v68
    %92 = vmatpush.msra.mxu0 %v67
    %93 = vmatpush.msra.mxu0 %v66
    %94 = vmatpush.msra.mxu0 %v65
    %95 = vmatpush.msra.mxu0 %v64
    %96 = vmatmul.f32.gmra.mxu0 %v78
    %v97 = vpop.f32.mrf.mxu0
    %v98 = vadd.f32 %v74, %v97
    %99 = vdwg.mxu0
    %v100 = vtanh.pop %v98
    %v102 = vperm.slane %v28, 0
    %v104 = vmul.f32 %v100, %v102
    %v105 = vmul.f32 %v104, 1.442695
    %v106 = vpow.pop %v105
    %v107 = vmul.f32 %v26, %v106
    %109 = vrot.lane.b32.xlu0 %v98, 112
    %v110 = vpop.permute.xlu0 %109
    %v112 = vadd.f32 %v107, %v110
    %v113 = vmul.f32 %v102, %v112
    %v114 = vadd.f32 %v32, %v113
    %115 = vst.msk [vmem:[#allocation2] sm:$0xff] %vm39, %v114
    %v116 = vsel %vm39, %v104, 0.0
    %117 = vadd.xlane.f32.xlu0 %v116
    %v118 = vpop.xlane.xlu0 %117
    %vm119 = vcmask 7168
    %120 = vst.msk [vmem:[%s7] sm:$0xff] %vm119, %v118
    // Predicated region
    $region26: #{tpu_custom_call.1} parent=1 // pred_check
      _
    $region27: #{tpu_custom_call.1} parent=1 // pred_check_branch
      %122 = sbr.rel (0) target = $region29
    $region28: #{tpu_custom_call.1} parent=1 // pred_region
      %124 = vsyncadd [#allocation3], 0
      %s126 = sshll.u32 [#allocation2], 4
      %s127 = int_to_ptr.vmem [resolvable:$true] %s126
      %s128 = sshll.u32 %s6, 4
      %s129 = int_to_ptr.hbm [resolvable:$true] %s128
      %131 = dma.vmem_to_hbm [thread:$0]  %s127, 128, %s129, [#allocation3]
    $region29: #{tpu_custom_call.1} parent=1 // pred_fallthru
      _
    // Predicated region
    $region30: #{tpu_custom_call.1} parent=1 // pred_check
      _
    $region31: #{tpu_custom_call.1} parent=1 // pred_check_branch
      %133 = sbr.rel (0) target = $region33
    $region32: #{tpu_custom_call.1} parent=1 // pred_region
      _
    $region33: #{tpu_custom_call.1} parent=1 // pred_fallthru
      _
    // Predicated region
    $region34: #{tpu_custom_call.1} parent=1 // pred_check
      _
    $region35: #{tpu_custom_call.1} parent=1 // pred_check_branch
      %135 = sbr.rel (0) target = $region37
    $region36: #{tpu_custom_call.1} parent=1 // pred_region
      %137 = dma.done [#allocation3], 128
    $region37: #{tpu_custom_call.1} parent=1 // pred_fallthru
      _
    // Predicated region
    $region38: #{tpu_custom_call.1} parent=1 // pred_check
      _
    $region39: #{tpu_custom_call.1} parent=1 // pred_check_branch
      %139 = sbr.rel (0) target = $region41
    $region40: #{tpu_custom_call.1} parent=1 // pred_region
      _
    $region41: #{tpu_custom_call.1} parent=1 // pred_fallthru
      _
    %140 = vsyncpa [#allocation3], 1

</llo_original>
